<compile_context>
chip_gen: v5e
topology: v5e:2x2
jax: 0.10.0
libtpu: 0.0.40
codegen_flags: <defaults>
</compile_context>

<pallas_src>
import jax
import jax.numpy as jnp
from jax.experimental import pallas as pl
from jax.experimental.pallas import tpu as pltpu


_TARGET_BLOCK_BYTES = 4 * 1024 * 1024     # ~85% of HBM roofline per measurements
_VMEM_LIMIT_BYTES = 32 * 1024 * 1024      # 4 x 4 MiB live buffers + headroom; fits v7x
_DEFAULT_DMA_CHUNK_BYTES = 8 * 1024 * 1024
_DEFAULT_MIN_PALLAS_BYTES = 256 * 1024


# ----------------------------------------------------------------------------
# Shape helpers
# ----------------------------------------------------------------------------
def _resolve_size(size, total):
    """Resolve a PyTorch-style view size (may contain a single -1)."""
    size = tuple(int(s) for s in size)
    if -1 in size:
        neg_idx = size.index(-1)
        known = 1
        for i, s in enumerate(size):
            if i != neg_idx:
                known *= s
        assert known != 0 and total % known == 0, "view size is not compatible"
        size = size[:neg_idx] + (total // known,) + size[neg_idx + 1:]
    prod = 1
    for s in size:
        prod *= s
    assert prod == total, "view size is not compatible with input"
    return size


def _choose_cols(total_aligned):
    """Widest lane-dense last dim for a 128-aligned element count (cap 8192)."""
    lanes = 128
    q = total_aligned // lanes
    for mult in range(min(64, q), 0, -1):   # cols <= 64 * 128 = 8192
        if q % mult == 0:
            return lanes * mult
    return lanes


def _choose_row_tile(rows, cols, itemsize):
    """Row tile giving ~4 MiB blocks, aligned to the dtype sublane minimum."""
    sublane = {1: 32, 2: 16, 4: 8}.get(itemsize, 8)
    if rows <= sublane:
        return rows                          # block == full rows dim: always legal
    tr = max(sublane, _TARGET_BLOCK_BYTES // (cols * itemsize))
    tr = (tr // sublane) * sublane
    return min(tr, rows)


# ----------------------------------------------------------------------------
# Path 1: tiled, VMEM-staged identity copy (lane-dense)
# ----------------------------------------------------------------------------
def _copy_kernel(x_ref, o_ref):
    # Identity copy of one (tile_rows, cols) VMEM block.
    o_ref[...] = x_ref[...]


def _tiled_slab_copy(x2d, rows, cols, dtype, itemsize):
    tr = _choose_row_tile(rows, cols, itemsize)
    return pl.pallas_call(
        _copy_kernel,
        out_shape=jax.ShapeDtypeStruct((rows, cols), dtype),
        grid=(pl.cdiv(rows, tr),),
        in_specs=[pl.BlockSpec((tr, cols), lambda i: (i, 0))],
        out_specs=pl.BlockSpec((tr, cols), lambda i: (i, 0)),
        # TODO(synk): on v7x, pltpu.CORE_PARALLEL (or pl.core_map over a
        # tensorcore mesh) could split the copy across both TensorCores.
        compiler_params=pltpu.CompilerParams(
            dimension_semantics=("parallel",),
            vmem_limit_bytes=_VMEM_LIMIT_BYTES),
        cost_estimate=pl.CostEstimate(
            flops=0, transcendentals=0,
            bytes_accessed=2 * rows * cols * itemsize),
    )(x2d)


def _materialized_copy_tiled(flat, total, dtype):
    itemsize = jnp.dtype(dtype).itemsize
    lanes = 128
    main = (total // lanes) * lanes
    rem = total - main

    pieces = []
    if main > 0:
        cols = _choose_cols(main)
        rows = main // cols
        out_main = _tiled_slab_copy(
            flat[:main].reshape(rows, cols), rows, cols, dtype, itemsize)
        pieces.append(out_main.reshape(-1))
    if rem > 0:
        # Tiny (< 128 elem) non-lane-dense tail: single full-array block.
        out_tail = _tiled_slab_copy(
            flat[main:].reshape(1, rem), 1, rem, dtype, itemsize)
        pieces.append(out_tail.reshape(-1))
    if len(pieces) == 1:
        return pieces[0]
    # TODO(synk): concat re-touches the data once; only hit for non-128-aligned
    # totals on the tiled path (the DMA path has no such constraint).
    return jnp.concatenate(pieces)


# ----------------------------------------------------------------------------
# Path 2: direct HBM->HBM chunked DMA copy (no VMEM staging, no grid)
# ----------------------------------------------------------------------------
def _materialized_copy_dma(flat, total, dtype, chunk_bytes):
    itemsize = jnp.dtype(dtype).itemsize
    chunk_elems = max(1, int(chunk_bytes) // itemsize)
    n_full = total // chunk_elems
    rem = total - n_full * chunk_elems

    def kernel(x_hbm, o_hbm, sem):
        def full_copy(ci, slot):
            off = ci * chunk_elems
            return pltpu.make_async_copy(
                x_hbm.at[pl.ds(off, chunk_elems)],
                o_hbm.at[pl.ds(off, chunk_elems)],
                sem.at[slot])

        if n_full > 0:
            # Prime the pipeline, then keep up to two DMAs in flight.
            full_copy(0, 0).start()

            @pl.loop(0, n_full)
            def _(ci):
                slot = ci & 1

                @pl.when(ci + 1 < n_full)
                def _():
                    full_copy(ci + 1, 1 - slot).start()

                full_copy(ci, slot).wait()

        if rem > 0:
            off = n_full * chunk_elems
            tail = pltpu.make_async_copy(
                x_hbm.at[pl.ds(off, rem)],
                o_hbm.at[pl.ds(off, rem)],
                sem.at[0])
            tail.start()
            tail.wait()

    return pl.pallas_call(
        kernel,
        out_shape=jax.ShapeDtypeStruct((total,), dtype),
        in_specs=[pl.BlockSpec(memory_space=pl.ANY)],
        out_specs=pl.BlockSpec(memory_space=pl.ANY),
        scratch_shapes=[pltpu.SemaphoreType.DMA((2,))],
        cost_estimate=pl.CostEstimate(
            flops=0, transcendentals=0,
            bytes_accessed=2 * total * itemsize),
    )(flat)


# ----------------------------------------------------------------------------
# Module
# ----------------------------------------------------------------------------
class View:
    """JAX/Pallas equivalent of the PyTorch View module.

    materialize=False (default, recommended): metadata-only reshape, zero HBM
    traffic — exactly torch `.view` on a contiguous tensor.
    materialize=True: route the data through a Pallas copy kernel.
      method="auto" (default): direct HBM->HBM chunked DMA, falling back to the
        tiled VMEM-staged copy if the backend rejects HBM->HBM DMA.
      method="dma" / "tiled": force one path.
    Inputs smaller than `min_pallas_bytes` skip Pallas (launch overhead wins).
    """

    def __init__(self, size, materialize=False, method="auto",
                 min_pallas_bytes=_DEFAULT_MIN_PALLAS_BYTES,
                 dma_chunk_bytes=_DEFAULT_DMA_CHUNK_BYTES):
        self.size = tuple(size)
        self.materialize = materialize
        self.method = method
        self.min_pallas_bytes = min_pallas_bytes
        self.dma_chunk_bytes = dma_chunk_bytes

    def __call__(self, tensor):
        total = tensor.size
        target_shape = _resolve_size(self.size, total)

        if not self.materialize or total == 0:
            # Zero-copy path: XLA reshape of a contiguous array is a bitcast.
            return tensor.reshape(target_shape)

        itemsize = jnp.dtype(tensor.dtype).itemsize
        if total * itemsize < self.min_pallas_bytes:
            # KB-scale copies: fixed pallas_call overhead dominates.
            return jnp.copy(tensor).reshape(target_shape)

        # Row-major flatten preserves element order, same as torch .view on a
        # contiguous tensor; the final reshape is metadata only.
        flat = tensor.reshape(-1)
        if self.method == "tiled":
            out = _materialized_copy_tiled(flat, total, tensor.dtype)
        elif self.method == "dma":
            out = _materialized_copy_dma(flat, total, tensor.dtype,
                                         self.dma_chunk_bytes)
        else:  # "auto": prefer the DMA path; fall back to the proven tiled copy.
            try:
                out = _materialized_copy_dma(flat, total, tensor.dtype,
                                             self.dma_chunk_bytes)
            except Exception:
                out = _materialized_copy_tiled(flat, total, tensor.dtype)
        return out.reshape(target_shape)


if __name__ == "__main__":
    key = jax.random.PRNGKey(0)

    # Small NCHW input: batch=2, channels=4, spatial=16x16 (2048 elems, 8 KiB).
    x = jax.random.normal(key, (2, 4, 16, 16), dtype=jnp.float32)
    y_ref = x.reshape(2, -1)

    # 1) Materialized path, default method="auto" (direct HBM->HBM chunked DMA).
    #    min_pallas_bytes=0 forces the Pallas kernel at this tiny size; a small
    #    chunk exercises the prime + double-buffered loop + tail-DMA code paths.
    v_dma = View((2, -1), materialize=True, min_pallas_bytes=0,
                 dma_chunk_bytes=3000)
    y = jax.block_until_ready(v_dma(x))
    assert y.shape == (2, 4 * 16 * 16), y.shape
    assert y.dtype == x.dtype
    assert bool(jnp.array_equal(y, y_ref))

    # 2) Materialized path, explicit tiled VMEM-staged lane-dense copy.
    x2 = jax.random.normal(jax.random.PRNGKey(0), (8, 64, 128), dtype=jnp.float32)
    v_tiled = View((-1, 128), materialize=True, method="tiled", min_pallas_bytes=0)
    z = jax.block_until_ready(v_tiled(x2))
    assert z.shape == (8 * 64, 128)
    assert bool(jnp.array_equal(z, x2.reshape(-1, 128)))

    # 3) Non-128-aligned element count through the tiled path: 128-aligned main
    #    slab + tiny remainder (the previous version's one real failure mode).
    x3 = jax.random.normal(key, (2, 131), dtype=jnp.float32)   # 262 elements
    v_rem = View((131, 2), materialize=True, method="tiled", min_pallas_bytes=0)
    w = jax.block_until_ready(v_rem(x3))
    assert w.shape == (131, 2)
    assert bool(jnp.array_equal(w, x3.reshape(131, 2)))

    # 4) Default zero-copy path (recommended): metadata-only reshape.
    v_fast = View((2, -1))
    y2 = jax.block_until_ready(v_fast(x))
    assert y2.shape == (2, 4 * 16 * 16)
    assert bool(jnp.array_equal(y2, y_ref))

    print("KERNEL_OK")
</pallas_src>

<mosaic_0001>
module attributes {stable_mosaic.version = 11 : i64} {
  func.func @_copy_kernel(%arg0: i32, %arg1: memref<1x2048xf32, #tpu.memory_space<vmem>>, %arg2: memref<1x2048xf32, #tpu.memory_space<vmem>>) attributes {dimension_semantics = [#tpu.dimension_semantics<parallel>], iteration_bounds = array<i64: 1>, scalar_prefetch = 0 : i64, scratch_operands = 0 : i64, tpu.core_type = #tpu.core_type<tc>, window_params = [{transform_indices = @transform_0, window_bounds = array<i64: 1, 2048>}, {transform_indices = @transform_1, window_bounds = array<i64: 1, 2048>}]} {
    %c0 = arith.constant 0 : index
    %c0_0 = arith.constant 0 : index
    %0 = vector.load %arg1[%c0, %c0_0] : memref<1x2048xf32, #tpu.memory_space<vmem>>, vector<1x2048xf32>
    %c0_1 = arith.constant 0 : index
    %c0_2 = arith.constant 0 : index
    %1 = vector.load %arg2[%c0_1, %c0_2] : memref<1x2048xf32, #tpu.memory_space<vmem>>, vector<1x2048xf32>
    tpu.vector_store %arg2[%c0_1, %c0_2], %0 {strides = array<i32>} : memref<1x2048xf32, #tpu.memory_space<vmem>>, vector<1x2048xf32>,
    return
  }
  func.func @transform_0(%arg0: i32) -> (i32, i32) {
    %c0_i32 = arith.constant 0 : i32
    %c0_i32_0 = arith.constant 0 : i32
    return %arg0, %c0_i32 : i32, i32
  }
  func.func @transform_1(%arg0: i32) -> (i32, i32) {
    %c0_i32 = arith.constant 0 : i32
    %c0_i32_0 = arith.constant 0 : i32
    return %arg0, %c0_i32 : i32, i32
  }
}

</mosaic_0001>

<llo_original>
// kernel: tpu_custom_call.1
$region0: #{tpu_custom_call.1}
  #allocation0 [shape = 'u32[]', space=smem, size = 0x4, offset = 0x4, fixed_abs, tag = 'smem constant byte address 0x4 - core index']
  #allocation1 [shape = 'u32[72,128]{1,0:T(1,128)}', space=vmem, size = 0x9000, scoped, tag = 'internal scratch']
  %s0 = inlined_call_operand.hbm [shape: f32[1,2048], index: 0, kind: input, shape index: {}]
  %s1 = inlined_call_operand.hbm [shape: f32[1,2048], index: 1, kind: output, shape index: {}]
  %s2 = sld [smem:[#allocation0]]
  $region18: #{tpu_custom_call.1} parent=0
    _
  %s4 = ssub.s32 1, %s2
  %s5 = scalar_select 0, %s4, %s2
  $region1: #{tpu_custom_call.1} parent=0
    #allocation2 [shape = 'u8[8192]{0}', space=vmem, size = 0x2000, scoped, tag = 'input window, operand 0, single buffered']
    #allocation3 [shape = 's32[1]{0}', space=sflag, size = 0x4, scoped, tag = 'scoped memory for tpu_custom_call.1']
    #allocation4 [shape = 's32[1]{0}', space=sflag, size = 0x4, scoped, tag = 'scoped memory for tpu_custom_call.1']
    #allocation5 [shape = 'u8[8192]{0}', space=vmem, size = 0x2000, scoped, tag = 'output window, operand 0, single buffered']
    %6 = vsyncpa [#allocation3], 0
    %7 = vsyncpa [#allocation4], 0
    // Predicated region
    $region2: #{tpu_custom_call.1} parent=1 // pred_check
      _
    $region3: #{tpu_custom_call.1} parent=1 // pred_check_branch
      %9 = sbr.rel (0) target = $region5
    $region4: #{tpu_custom_call.1} parent=1 // pred_region
      %11 = vsyncadd [#allocation3], 0
      %s13 = sshll.u32 %s0, 4
      %s14 = int_to_ptr.hbm [resolvable:$true] %s13
      %s15 = sshll.u32 [#allocation2], 4
      %s16 = int_to_ptr.vmem [resolvable:$true] %s15
      %18 = dma.hbm_to_vmem [thread:$0]  %s14, 256, %s16, [#allocation3]
    $region5: #{tpu_custom_call.1} parent=1 // pred_fallthru
      _
    // Predicated region
    $region6: #{tpu_custom_call.1} parent=1 // pred_check
      _
    $region7: #{tpu_custom_call.1} parent=1 // pred_check_branch
      %20 = sbr.rel (0) target = $region9
    $region8: #{tpu_custom_call.1} parent=1 // pred_region
      %22 = dma.done [#allocation3], 256
    $region9: #{tpu_custom_call.1} parent=1 // pred_fallthru
      _
    %v23 = vld [vmem:[#allocation2] sm:$0xff]
    %v24 = vld [vmem:[#allocation2 + $0x8] sm:$0xff]
    %25 = vst [vmem:[#allocation5] sm:$0xff] %v23
    %26 = vst [vmem:[#allocation5 + $0x8] sm:$0xff] %v24
    // Predicated region
    $region10: #{tpu_custom_call.1} parent=1 // pred_check
      _
    $region11: #{tpu_custom_call.1} parent=1 // pred_check_branch
      %28 = sbr.rel (0) target = $region13
    $region12: #{tpu_custom_call.1} parent=1 // pred_region
      %30 = vsyncadd [#allocation4], 0
      %s32 = sshll.u32 [#allocation5], 4
      %s33 = int_to_ptr.vmem [resolvable:$true] %s32
      %s34 = sshll.u32 %s1, 4
      %s35 = int_to_ptr.hbm [resolvable:$true] %s34
      %37 = dma.vmem_to_hbm [thread:$0]  %s33, 256, %s35, [#allocation4]
    $region13: #{tpu_custom_call.1} parent=1 // pred_fallthru
      _
    // Predicated region
    $region14: #{tpu_custom_call.1} parent=1 // pred_check
      _
    $region15: #{tpu_custom_call.1} parent=1 // pred_check_branch
      %39 = sbr.rel (0) target = $region17
    $region16: #{tpu_custom_call.1} parent=1 // pred_region
      %41 = dma.done [#allocation4], 256
    $region17: #{tpu_custom_call.1} parent=1 // pred_fallthru
      _
    %42 = vsyncpa [#allocation3], 1
    %43 = vsyncpa [#allocation4], 1

</llo_original>
